<compile_context>
chip_gen: v7x
topology: tpu7x:2x2x1
jax: 0.10.0
libtpu: 0.0.40
codegen_flags: <defaults>
</compile_context>

<pallas_src>
import math
import jax
import jax.numpy as jnp
from jax.experimental import pallas as pl
from jax.experimental.pallas import tpu as pltpu

EPS = 1e-5


def _bn_scale_shift(h, gamma, beta, inv_b):
    """Single-pass batch stats; returns per-feature scale/shift so that
    BN(h) == h * scale + shift (training-mode BatchNorm1d, biased variance)."""
    s1 = jnp.sum(h, axis=0, keepdims=True)
    s2 = jnp.sum(h * h, axis=0, keepdims=True)
    mu = s1 * inv_b
    var = jnp.maximum(s2 * inv_b - mu * mu, 0.0)  # clamp: guards cancellation
    scale = gamma * jax.lax.rsqrt(var + EPS)
    shift = beta - mu * scale
    return scale, shift


def linear_gen_kernel(
    x_ref,
    g1_ref, be1_ref, w1_ref, b1_ref,
    g2_ref, be2_ref, w2_ref, b2_ref,
    g3_ref, be3_ref, w3_ref, b3_ref,
    o_ref,
):
    x = x_ref[...].astype(jnp.float32)
    inv_b = 1.0 / x.shape[0]

    def bn_linear(h, g_ref, be_ref, w_ref, b_ref):
        scale, shift = _bn_scale_shift(h, g_ref[...], be_ref[...], inv_b)
        w = w_ref[...]  # bf16 weights, f32 accumulation on the MXU
        # Fold the BN shift into the bias: (h*s + shift) @ W + b = (h*s) @ W + (b + shift @ W)
        b_eff = b_ref[...] + jnp.dot(
            shift.astype(w.dtype), w, preferred_element_type=jnp.float32
        )
        hn = (h * scale).astype(w.dtype)  # bf16 MXU operand
        return jnp.dot(hn, w, preferred_element_type=jnp.float32) + b_eff

    # BN1 -> Linear(z_dim -> H) -> ReLU
    h = jnp.maximum(bn_linear(x, g1_ref, be1_ref, w1_ref, b1_ref), 0.0)
    # BN2 -> Linear(H -> H) -> ReLU
    h = jnp.maximum(bn_linear(h, g2_ref, be2_ref, w2_ref, b2_ref), 0.0)
    # BN3 -> Linear(H -> out_pad) -> Tanh   (tanh -> EUP slot)
    z = bn_linear(h, g3_ref, be3_ref, w3_ref, b3_ref)
    o_ref[...] = jnp.tanh(z).astype(o_ref.dtype)


def linear_gen_forward(x, params):
    B = x.shape[0]
    z_dim, hidden = params["w1"].shape
    out_dim = params["w3"].shape[1]

    # Lane-dense output: pad the final layer's output dim to a multiple of 128.
    opad = ((out_dim + 127) // 128) * 128
    w3, b3 = params["w3"], params["b3"]
    if opad != out_dim:
        w3 = jnp.pad(w3, ((0, 0), (0, opad - out_dim)))
        b3 = jnp.pad(b3, ((0, 0), (0, opad - out_dim)))

    args = (
        x,
        params["g1"], params["be1"], params["w1"], params["b1"],
        params["g2"], params["be2"], params["w2"], params["b2"],
        params["g3"], params["be3"], w3, b3,
    )

    # VMEM budget (explicit, safe for v7x's smaller VMEM) + scheduler cost hint.
    in_bytes = sum(int(a.size) * a.dtype.itemsize for a in args)
    out_bytes = B * opad * 4
    total_bytes = in_bytes + out_bytes
    vmem_limit = int(min(max(4 * 1024 * 1024, 4 * total_bytes), 32 * 1024 * 1024))
    flops = 2 * (B + 1) * (z_dim * hidden + hidden * hidden + hidden * opad)
    transcendentals = (z_dim + 2 * hidden) + B * opad  # rsqrt per feature + tanh

    vmem_spec = pl.BlockSpec(memory_space=pltpu.MemorySpace.VMEM)
    out = pl.pallas_call(
        linear_gen_kernel,
        out_shape=jax.ShapeDtypeStruct((B, opad), jnp.float32),
        in_specs=[vmem_spec] * len(args),
        out_specs=vmem_spec,
        compiler_params=pltpu.CompilerParams(vmem_limit_bytes=vmem_limit),
        cost_estimate=pl.CostEstimate(
            flops=flops, transcendentals=transcendentals, bytes_accessed=total_bytes
        ),
    )(*args)
    return out[:, :out_dim]


def init_params(key, z_dim, input_features, hidden_dim):
    """PyTorch-default init: Linear W,b ~ U(-1/sqrt(fan_in), +1/sqrt(fan_in));
    BatchNorm gamma=1, beta=0. Weights stored bf16 (MXU operands), rest f32."""
    ks = jax.random.split(key, 6)

    def linear(kw, kb, fan_in, fan_out):
        bound = 1.0 / math.sqrt(fan_in)
        # stored transposed vs PyTorch: (fan_in, fan_out) so kernel does x @ W
        w = jax.random.uniform(kw, (fan_in, fan_out), jnp.float32, -bound, bound)
        b = jax.random.uniform(kb, (1, fan_out), jnp.float32, -bound, bound)
        return w.astype(jnp.bfloat16), b

    w1, b1 = linear(ks[0], ks[1], z_dim, hidden_dim)
    w2, b2 = linear(ks[2], ks[3], hidden_dim, hidden_dim)
    w3, b3 = linear(ks[4], ks[5], hidden_dim, input_features)

    return {
        "g1": jnp.ones((1, z_dim), jnp.float32),
        "be1": jnp.zeros((1, z_dim), jnp.float32),
        "w1": w1, "b1": b1,
        "g2": jnp.ones((1, hidden_dim), jnp.float32),
        "be2": jnp.zeros((1, hidden_dim), jnp.float32),
        "w2": w2, "b2": b2,
        "g3": jnp.ones((1, hidden_dim), jnp.float32),
        "be3": jnp.zeros((1, hidden_dim), jnp.float32),
        "w3": w3, "b3": b3,
    }


def reference_forward(x, p):
    """Pure-JAX reference with textbook training-mode BN; matmul operands cast to
    bf16 (same MXU precision as the kernel), everything else f32."""
    def bn(h, g, b):
        mu = jnp.mean(h, axis=0, keepdims=True)
        var = jnp.mean((h - mu) ** 2, axis=0, keepdims=True)
        return (h - mu) * jax.lax.rsqrt(var + EPS) * g + b

    def lin(h, w, b):
        return jnp.dot(h.astype(jnp.bfloat16), w.astype(jnp.bfloat16),
                       preferred_element_type=jnp.float32) + b

    h = jnp.maximum(lin(bn(x, p["g1"], p["be1"]), p["w1"], p["b1"]), 0.0)
    h = jnp.maximum(lin(bn(h, p["g2"], p["be2"]), p["w2"], p["b2"]), 0.0)
    z = lin(bn(h, p["g3"], p["be3"]), p["w3"], p["b3"])
    return jnp.tanh(z)


if __name__ == "__main__":
    B, Z, H, F = 8, 16, 32, 24  # batch, z_dim, hidden_dim, input_features
    key = jax.random.PRNGKey(0)
    kx, kp = jax.random.split(key)
    x = jax.random.normal(kx, (B, Z), jnp.float32)
    params = init_params(kp, Z, F, H)

    out = linear_gen_forward(x, params)
    out = jax.block_until_ready(out)

    ref = reference_forward(x, params)
    assert out.shape == (B, F), out.shape
    # Tolerance accounts for bf16 MXU operands + BN-fold op reordering.
    assert jnp.allclose(out, ref, atol=2e-2, rtol=2e-2), (out, ref)
    print("KERNEL_OK")
</pallas_src>

<mosaic_0001>
module attributes {stable_mosaic.version = 11 : i64} {
  func.func @linear_gen_kernel(%arg0: memref<8x16xf32, #tpu.memory_space<vmem>>, %arg1: memref<1x16xf32, #tpu.memory_space<vmem>>, %arg2: memref<1x16xf32, #tpu.memory_space<vmem>>, %arg3: memref<16x32xbf16, #tpu.memory_space<vmem>>, %arg4: memref<1x32xf32, #tpu.memory_space<vmem>>, %arg5: memref<1x32xf32, #tpu.memory_space<vmem>>, %arg6: memref<1x32xf32, #tpu.memory_space<vmem>>, %arg7: memref<32x32xbf16, #tpu.memory_space<vmem>>, %arg8: memref<1x32xf32, #tpu.memory_space<vmem>>, %arg9: memref<1x32xf32, #tpu.memory_space<vmem>>, %arg10: memref<1x32xf32, #tpu.memory_space<vmem>>, %arg11: memref<32x128xbf16, #tpu.memory_space<vmem>>, %arg12: memref<1x128xf32, #tpu.memory_space<vmem>>, %arg13: memref<8x128xf32, #tpu.memory_space<vmem>>) attributes {dimension_semantics = [], scalar_prefetch = 0 : i64, scratch_operands = 0 : i64, tpu.core_type = #tpu.core_type<tc>} {
    %c0 = arith.constant 0 : index
    %c0_0 = arith.constant 0 : index
    %0 = vector.load %arg0[%c0, %c0_0] : memref<8x16xf32, #tpu.memory_space<vmem>>, vector<8x16xf32>
    %c0_1 = arith.constant 0 : index
    %c0_2 = arith.constant 0 : index
    %1 = vector.load %arg1[%c0_1, %c0_2] : memref<1x16xf32, #tpu.memory_space<vmem>>, vector<1x16xf32>
    %c0_3 = arith.constant 0 : index
    %c0_4 = arith.constant 0 : index
    %2 = vector.load %arg2[%c0_3, %c0_4] : memref<1x16xf32, #tpu.memory_space<vmem>>, vector<1x16xf32>
    %cst = arith.constant dense<0.000000e+00> : vector<16xf32>
    %3 = vector.multi_reduction <add>, %0, %cst [0] : vector<8x16xf32> to vector<16xf32>
    %4 = vector.shape_cast %3 : vector<16xf32> to vector<1x16xf32>
    %5 = arith.mulf %0, %0 : vector<8x16xf32>
    %cst_5 = arith.constant dense<0.000000e+00> : vector<16xf32>
    %6 = vector.multi_reduction <add>, %5, %cst_5 [0] : vector<8x16xf32> to vector<16xf32>
    %7 = vector.shape_cast %6 : vector<16xf32> to vector<1x16xf32>
    %cst_6 = arith.constant 1.250000e-01 : f32
    %8 = vector.broadcast %cst_6 : f32 to vector<1x16xf32>
    %9 = arith.mulf %4, %8 : vector<1x16xf32>
    %cst_7 = arith.constant 1.250000e-01 : f32
    %10 = vector.broadcast %cst_7 : f32 to vector<1x16xf32>
    %11 = arith.mulf %7, %10 : vector<1x16xf32>
    %12 = arith.mulf %9, %9 : vector<1x16xf32>
    %13 = arith.subf %11, %12 : vector<1x16xf32>
    %cst_8 = arith.constant 0.000000e+00 : f32
    %14 = vector.broadcast %cst_8 : f32 to vector<1x16xf32>
    %15 = arith.maximumf %13, %14 : vector<1x16xf32>
    %cst_9 = arith.constant 9.99999974E-6 : f32
    %16 = vector.broadcast %cst_9 : f32 to vector<1x16xf32>
    %17 = arith.addf %15, %16 : vector<1x16xf32>
    %18 = math.rsqrt %17 : vector<1x16xf32>
    %19 = arith.mulf %1, %18 : vector<1x16xf32>
    %20 = arith.mulf %9, %19 : vector<1x16xf32>
    %21 = arith.subf %2, %20 : vector<1x16xf32>
    %c0_10 = arith.constant 0 : index
    %c0_11 = arith.constant 0 : index
    %22 = vector.load %arg3[%c0_10, %c0_11] : memref<16x32xbf16, #tpu.memory_space<vmem>>, vector<16x32xbf16>
    %c0_12 = arith.constant 0 : index
    %c0_13 = arith.constant 0 : index
    %23 = vector.load %arg4[%c0_12, %c0_13] : memref<1x32xf32, #tpu.memory_space<vmem>>, vector<1x32xf32>
    %24 = arith.truncf %21 : vector<1x16xf32> to vector<1x16xbf16>
    %cst_14 = arith.constant dense<0.000000e+00> : vector<1x32xf32>
    %25 = tpu.matmul %24, %22, %cst_14 {dimension_numbers = #tpu.dot_dimension_numbers<[1], [0], [0], [1], [0, 0, 1, 1], [], []>} : vector<1x16xbf16>, vector<16x32xbf16>, vector<1x32xf32> -> vector<1x32xf32>
    %26 = arith.addf %23, %25 : vector<1x32xf32>
    %27 = vector.broadcast %19 : vector<1x16xf32> to vector<8x16xf32>
    %28 = arith.mulf %0, %27 : vector<8x16xf32>
    %29 = arith.truncf %28 : vector<8x16xf32> to vector<8x16xbf16>
    %cst_15 = arith.constant dense<0.000000e+00> : vector<8x32xf32>
    %30 = tpu.matmul %29, %22, %cst_15 {dimension_numbers = #tpu.dot_dimension_numbers<[1], [0], [0], [1], [0, 0, 1, 1], [], []>} : vector<8x16xbf16>, vector<16x32xbf16>, vector<8x32xf32> -> vector<8x32xf32>
    %31 = vector.broadcast %26 : vector<1x32xf32> to vector<8x32xf32>
    %32 = arith.addf %30, %31 : vector<8x32xf32>
    %cst_16 = arith.constant 0.000000e+00 : f32
    %33 = vector.broadcast %cst_16 : f32 to vector<8x32xf32>
    %34 = arith.maximumf %32, %33 : vector<8x32xf32>
    %c0_17 = arith.constant 0 : index
    %c0_18 = arith.constant 0 : index
    %35 = vector.load %arg5[%c0_17, %c0_18] : memref<1x32xf32, #tpu.memory_space<vmem>>, vector<1x32xf32>
    %c0_19 = arith.constant 0 : index
    %c0_20 = arith.constant 0 : index
    %36 = vector.load %arg6[%c0_19, %c0_20] : memref<1x32xf32, #tpu.memory_space<vmem>>, vector<1x32xf32>
    %cst_21 = arith.constant dense<0.000000e+00> : vector<32xf32>
    %37 = vector.multi_reduction <add>, %34, %cst_21 [0] : vector<8x32xf32> to vector<32xf32>
    %38 = vector.shape_cast %37 : vector<32xf32> to vector<1x32xf32>
    %39 = arith.mulf %34, %34 : vector<8x32xf32>
    %cst_22 = arith.constant dense<0.000000e+00> : vector<32xf32>
    %40 = vector.multi_reduction <add>, %39, %cst_22 [0] : vector<8x32xf32> to vector<32xf32>
    %41 = vector.shape_cast %40 : vector<32xf32> to vector<1x32xf32>
    %cst_23 = arith.constant 1.250000e-01 : f32
    %42 = vector.broadcast %cst_23 : f32 to vector<1x32xf32>
    %43 = arith.mulf %38, %42 : vector<1x32xf32>
    %cst_24 = arith.constant 1.250000e-01 : f32
    %44 = vector.broadcast %cst_24 : f32 to vector<1x32xf32>
    %45 = arith.mulf %41, %44 : vector<1x32xf32>
    %46 = arith.mulf %43, %43 : vector<1x32xf32>
    %47 = arith.subf %45, %46 : vector<1x32xf32>
    %cst_25 = arith.constant 0.000000e+00 : f32
    %48 = vector.broadcast %cst_25 : f32 to vector<1x32xf32>
    %49 = arith.maximumf %47, %48 : vector<1x32xf32>
    %cst_26 = arith.constant 9.99999974E-6 : f32
    %50 = vector.broadcast %cst_26 : f32 to vector<1x32xf32>
    %51 = arith.addf %49, %50 : vector<1x32xf32>
    %52 = math.rsqrt %51 : vector<1x32xf32>
    %53 = arith.mulf %35, %52 : vector<1x32xf32>
    %54 = arith.mulf %43, %53 : vector<1x32xf32>
    %55 = arith.subf %36, %54 : vector<1x32xf32>
    %c0_27 = arith.constant 0 : index
    %c0_28 = arith.constant 0 : index
    %56 = vector.load %arg7[%c0_27, %c0_28] : memref<32x32xbf16, #tpu.memory_space<vmem>>, vector<32x32xbf16>
    %c0_29 = arith.constant 0 : index
    %c0_30 = arith.constant 0 : index
    %57 = vector.load %arg8[%c0_29, %c0_30] : memref<1x32xf32, #tpu.memory_space<vmem>>, vector<1x32xf32>
    %58 = arith.truncf %55 : vector<1x32xf32> to vector<1x32xbf16>
    %cst_31 = arith.constant dense<0.000000e+00> : vector<1x32xf32>
    %59 = tpu.matmul %58, %56, %cst_31 {dimension_numbers = #tpu.dot_dimension_numbers<[1], [0], [0], [1], [0, 0, 1, 1], [], []>} : vector<1x32xbf16>, vector<32x32xbf16>, vector<1x32xf32> -> vector<1x32xf32>
    %60 = arith.addf %57, %59 : vector<1x32xf32>
    %61 = vector.broadcast %53 : vector<1x32xf32> to vector<8x32xf32>
    %62 = arith.mulf %34, %61 : vector<8x32xf32>
    %63 = arith.truncf %62 : vector<8x32xf32> to vector<8x32xbf16>
    %cst_32 = arith.constant dense<0.000000e+00> : vector<8x32xf32>
    %64 = tpu.matmul %63, %56, %cst_32 {dimension_numbers = #tpu.dot_dimension_numbers<[1], [0], [0], [1], [0, 0, 1, 1], [], []>} : vector<8x32xbf16>, vector<32x32xbf16>, vector<8x32xf32> -> vector<8x32xf32>
    %65 = vector.broadcast %60 : vector<1x32xf32> to vector<8x32xf32>
    %66 = arith.addf %64, %65 : vector<8x32xf32>
    %cst_33 = arith.constant 0.000000e+00 : f32
    %67 = vector.broadcast %cst_33 : f32 to vector<8x32xf32>
    %68 = arith.maximumf %66, %67 : vector<8x32xf32>
    %c0_34 = arith.constant 0 : index
    %c0_35 = arith.constant 0 : index
    %69 = vector.load %arg9[%c0_34, %c0_35] : memref<1x32xf32, #tpu.memory_space<vmem>>, vector<1x32xf32>
    %c0_36 = arith.constant 0 : index
    %c0_37 = arith.constant 0 : index
    %70 = vector.load %arg10[%c0_36, %c0_37] : memref<1x32xf32, #tpu.memory_space<vmem>>, vector<1x32xf32>
    %cst_38 = arith.constant dense<0.000000e+00> : vector<32xf32>
    %71 = vector.multi_reduction <add>, %68, %cst_38 [0] : vector<8x32xf32> to vector<32xf32>
    %72 = vector.shape_cast %71 : vector<32xf32> to vector<1x32xf32>
    %73 = arith.mulf %68, %68 : vector<8x32xf32>
    %cst_39 = arith.constant dense<0.000000e+00> : vector<32xf32>
    %74 = vector.multi_reduction <add>, %73, %cst_39 [0] : vector<8x32xf32> to vector<32xf32>
    %75 = vector.shape_cast %74 : vector<32xf32> to vector<1x32xf32>
    %cst_40 = arith.constant 1.250000e-01 : f32
    %76 = vector.broadcast %cst_40 : f32 to vector<1x32xf32>
    %77 = arith.mulf %72, %76 : vector<1x32xf32>
    %cst_41 = arith.constant 1.250000e-01 : f32
    %78 = vector.broadcast %cst_41 : f32 to vector<1x32xf32>
    %79 = arith.mulf %75, %78 : vector<1x32xf32>
    %80 = arith.mulf %77, %77 : vector<1x32xf32>
    %81 = arith.subf %79, %80 : vector<1x32xf32>
    %cst_42 = arith.constant 0.000000e+00 : f32
    %82 = vector.broadcast %cst_42 : f32 to vector<1x32xf32>
    %83 = arith.maximumf %81, %82 : vector<1x32xf32>
    %cst_43 = arith.constant 9.99999974E-6 : f32
    %84 = vector.broadcast %cst_43 : f32 to vector<1x32xf32>
    %85 = arith.addf %83, %84 : vector<1x32xf32>
    %86 = math.rsqrt %85 : vector<1x32xf32>
    %87 = arith.mulf %69, %86 : vector<1x32xf32>
    %88 = arith.mulf %77, %87 : vector<1x32xf32>
    %89 = arith.subf %70, %88 : vector<1x32xf32>
    %c0_44 = arith.constant 0 : index
    %c0_45 = arith.constant 0 : index
    %90 = vector.load %arg11[%c0_44, %c0_45] : memref<32x128xbf16, #tpu.memory_space<vmem>>, vector<32x128xbf16>
    %c0_46 = arith.constant 0 : index
    %c0_47 = arith.constant 0 : index
    %91 = vector.load %arg12[%c0_46, %c0_47] : memref<1x128xf32, #tpu.memory_space<vmem>>, vector<1x128xf32>
    %92 = arith.truncf %89 : vector<1x32xf32> to vector<1x32xbf16>
    %cst_48 = arith.constant dense<0.000000e+00> : vector<1x128xf32>
    %93 = tpu.matmul %92, %90, %cst_48 {dimension_numbers = #tpu.dot_dimension_numbers<[1], [0], [0], [1], [0, 0, 1, 1], [], []>} : vector<1x32xbf16>, vector<32x128xbf16>, vector<1x128xf32> -> vector<1x128xf32>
    %94 = arith.addf %91, %93 : vector<1x128xf32>
    %95 = vector.broadcast %87 : vector<1x32xf32> to vector<8x32xf32>
    %96 = arith.mulf %68, %95 : vector<8x32xf32>
    %97 = arith.truncf %96 : vector<8x32xf32> to vector<8x32xbf16>
    %cst_49 = arith.constant dense<0.000000e+00> : vector<8x128xf32>
    %98 = tpu.matmul %97, %90, %cst_49 {dimension_numbers = #tpu.dot_dimension_numbers<[1], [0], [0], [1], [0, 0, 1, 1], [], []>} : vector<8x32xbf16>, vector<32x128xbf16>, vector<8x128xf32> -> vector<8x128xf32>
    %99 = vector.broadcast %94 : vector<1x128xf32> to vector<8x128xf32>
    %100 = arith.addf %98, %99 : vector<8x128xf32>
    %101 = math.tanh %100 : vector<8x128xf32>
    %c0_50 = arith.constant 0 : index
    %c0_51 = arith.constant 0 : index
    %102 = vector.load %arg13[%c0_50, %c0_51] : memref<8x128xf32, #tpu.memory_space<vmem>>, vector<8x128xf32>
    tpu.vector_store %arg13[%c0_50, %c0_51], %101 {strides = array<i32>} : memref<8x128xf32, #tpu.memory_space<vmem>>, vector<8x128xf32>,
    return
  }
}

</mosaic_0001>

<llo_original>
// kernel: tpu_custom_call.1
$region0: #{tpu_custom_call.1}
  #allocation0 [shape = 'u32[]', space=smem, size = 0x4, offset = 0x4, fixed_abs, tag = 'smem constant byte address 0x4 - core index']
  #allocation1 [shape = 'u32[144,128]{1,0:T(1,128)}', space=vmem, size = 0x12000, scoped, tag = 'internal scratch']
  %s0 = inlined_call_operand.hbm [shape: f32[8,16], index: 0, kind: input, shape index: {}]
  %s1 = inlined_call_operand.vmem [shape: f32[1,16], index: 1, kind: input, shape index: {}]
  %s2 = inlined_call_operand.vmem [shape: f32[1,16], index: 2, kind: input, shape index: {}]
  %s3 = inlined_call_operand.hbm [shape: bf16[16,32], index: 3, kind: input, shape index: {}]
  %s4 = inlined_call_operand.hbm [shape: f32[1,32], index: 4, kind: input, shape index: {}]
  %s5 = inlined_call_operand.hbm [shape: f32[1,32], index: 5, kind: input, shape index: {}]
  %s6 = inlined_call_operand.hbm [shape: f32[1,32], index: 6, kind: input, shape index: {}]
  %s7 = inlined_call_operand.vmem [shape: bf16[32,32], index: 7, kind: input, shape index: {}]
  %s8 = inlined_call_operand.hbm [shape: f32[1,32], index: 8, kind: input, shape index: {}]
  %s9 = inlined_call_operand.hbm [shape: f32[1,32], index: 9, kind: input, shape index: {}]
  %s10 = inlined_call_operand.vmem [shape: f32[1,32], index: 10, kind: input, shape index: {}]
  %s11 = inlined_call_operand.vmem [shape: bf16[32,128], index: 11, kind: input, shape index: {}]
  %s12 = inlined_call_operand.vmem [shape: f32[1,128], index: 12, kind: input, shape index: {}]
  %s13 = inlined_call_operand.hbm [shape: f32[8,128], index: 13, kind: output, shape index: {}]
  %s14 = sld [smem:[#allocation0]]
  $region90: #{tpu_custom_call.1} parent=0
    _
  %s16 = ssub.s32 1, %s14
  %s17 = scalar_select 0, %s16, %s14
  $region1: #{tpu_custom_call.1} parent=0
    #allocation2 [shape = 'u8[4096]{0}', space=vmem, size = 0x1000, scoped, tag = 'input window, operand 0, single buffered']
    #allocation3 [shape = 's32[1]{0}', space=sflag, size = 0x4, scoped, tag = 'scoped memory for tpu_custom_call.1']
    #allocation4 [shape = 's32[1]{0}', space=sflag, size = 0x4, scoped, tag = 'scoped memory for tpu_custom_call.1']
    #allocation5 [shape = 'u8[4096]{0}', space=vmem, size = 0x1000, scoped, tag = 'input window, operand 3, single buffered']
    #allocation6 [shape = 's32[1]{0}', space=sflag, size = 0x4, scoped, tag = 'scoped memory for tpu_custom_call.1']
    #allocation7 [shape = 'u8[512]{0}', space=vmem, size = 0x400, scoped, tag = 'input window, operand 4, single buffered']
    #allocation8 [shape = 'u8[512]{0}', space=vmem, size = 0x400, scoped, tag = 'input window, operand 5, single buffered']
    #allocation9 [shape = 's32[1]{0}', space=sflag, size = 0x4, scoped, tag = 'scoped memory for tpu_custom_call.1']
    #allocation10 [shape = 'u8[512]{0}', space=vmem, size = 0x400, scoped, tag = 'input window, operand 6, single buffered']
    #allocation11 [shape = 'u8[512]{0}', space=vmem, size = 0x400, scoped, tag = 'input window, operand 8, single buffered']
    #allocation12 [shape = 's32[1]{0}', space=sflag, size = 0x4, scoped, tag = 'scoped memory for tpu_custom_call.1']
    #allocation13 [shape = 'u8[512]{0}', space=vmem, size = 0x400, scoped, tag = 'input window, operand 9, single buffered']
    #allocation14 [shape = 'u8[4096]{0}', space=vmem, size = 0x1000, scoped, tag = 'output window, operand 0, single buffered']
    %18 = vsyncpa [#allocation3], 0
    %19 = vsyncpa [#allocation6], 0
    %20 = vsyncpa [#allocation9], 0
    %21 = vsyncpa [#allocation12], 0
    %22 = vsyncpa [#allocation4], 0
    // Predicated region
    $region2: #{tpu_custom_call.1} parent=1 // pred_check
      _
    $region3: #{tpu_custom_call.1} parent=1 // pred_check_branch
      %24 = sbr.rel (0) target = $region5
    $region4: #{tpu_custom_call.1} parent=1 // pred_region
      %s26 = ssub.s32 128, 128
      %27 = vsyncadd [#allocation3], %s26
      %s29 = sshll.u32 [#allocation2], 4
      %s30 = int_to_ptr.vmem [resolvable:$true] %s29
      %32 = dma.hbm_to_vmem [thread:$0]  %s0, 128, %s30, [#allocation3]
    $region5: #{tpu_custom_call.1} parent=1 // pred_fallthru
      _
    // Predicated region
    $region6: #{tpu_custom_call.1} parent=1 // pred_check
      _
    $region7: #{tpu_custom_call.1} parent=1 // pred_check_branch
      %34 = sbr.rel (0) target = $region9
    $region8: #{tpu_custom_call.1} parent=1 // pred_region
      _
    $region9: #{tpu_custom_call.1} parent=1 // pred_fallthru
      _
    // Predicated region
    $region10: #{tpu_custom_call.1} parent=1 // pred_check
      _
    $region11: #{tpu_custom_call.1} parent=1 // pred_check_branch
      %36 = sbr.rel (0) target = $region13
    $region12: #{tpu_custom_call.1} parent=1 // pred_region
      _
    $region13: #{tpu_custom_call.1} parent=1 // pred_fallthru
      _
    // Predicated region
    $region14: #{tpu_custom_call.1} parent=1 // pred_check
      _
    $region15: #{tpu_custom_call.1} parent=1 // pred_check_branch
      %38 = sbr.rel (0) target = $region17
    $region16: #{tpu_custom_call.1} parent=1 // pred_region
      %s40 = ssub.s32 128, 128
      %41 = vsyncadd [#allocation6], %s40
      %s42 = sshll.u32 [#allocation5], 4
      %s43 = int_to_ptr.vmem [resolvable:$true] %s42
      %48 = dma.hbm_to_vmem [thread:$0]  %s3, 128, %s43, [#allocation6], 64, 64, 4
    $region17: #{tpu_custom_call.1} parent=1 // pred_fallthru
      _
    // Predicated region
    $region18: #{tpu_custom_call.1} parent=1 // pred_check
      _
    $region19: #{tpu_custom_call.1} parent=1 // pred_check_branch
      %50 = sbr.rel (0) target = $region21
    $region20: #{tpu_custom_call.1} parent=1 // pred_region
      %s52 = ssub.s32 16, 16
      %53 = vsyncadd [#allocation6], %s52
      %s55 = sshll.u32 [#allocation7], 4
      %s56 = int_to_ptr.vmem [resolvable:$true] %s55
      %58 = dma.hbm_to_vmem [thread:$0]  %s4, 16, %s56, [#allocation6]
    $region21: #{tpu_custom_call.1} parent=1 // pred_fallthru
      _
    // Predicated region
    $region22: #{tpu_custom_call.1} parent=1 // pred_check
      _
    $region23: #{tpu_custom_call.1} parent=1 // pred_check_branch
      %60 = sbr.rel (0) target = $region25
    $region24: #{tpu_custom_call.1} parent=1 // pred_region
      %s62 = ssub.s32 16, 16
      %63 = vsyncadd [#allocation9], %s62
      %s65 = sshll.u32 [#allocation8], 4
      %s66 = int_to_ptr.vmem [resolvable:$true] %s65
      %68 = dma.hbm_to_vmem [thread:$0]  %s5, 16, %s66, [#allocation9]
    $region25: #{tpu_custom_call.1} parent=1 // pred_fallthru
      _
    // Predicated region
    $region26: #{tpu_custom_call.1} parent=1 // pred_check
      _
    $region27: #{tpu_custom_call.1} parent=1 // pred_check_branch
      %70 = sbr.rel (0) target = $region29
    $region28: #{tpu_custom_call.1} parent=1 // pred_region
      %s72 = ssub.s32 16, 16
      %73 = vsyncadd [#allocation9], %s72
      %s75 = sshll.u32 [#allocation10], 4
      %s76 = int_to_ptr.vmem [resolvable:$true] %s75
      %78 = dma.hbm_to_vmem [thread:$0]  %s6, 16, %s76, [#allocation9]
    $region29: #{tpu_custom_call.1} parent=1 // pred_fallthru
      _
    // Predicated region
    $region30: #{tpu_custom_call.1} parent=1 // pred_check
      _
    $region31: #{tpu_custom_call.1} parent=1 // pred_check_branch
      %80 = sbr.rel (0) target = $region33
    $region32: #{tpu_custom_call.1} parent=1 // pred_region
      _
    $region33: #{tpu_custom_call.1} parent=1 // pred_fallthru
      _
    // Predicated region
    $region34: #{tpu_custom_call.1} parent=1 // pred_check
      _
    $region35: #{tpu_custom_call.1} parent=1 // pred_check_branch
      %82 = sbr.rel (0) target = $region37
    $region36: #{tpu_custom_call.1} parent=1 // pred_region
      %s84 = ssub.s32 16, 16
      %85 = vsyncadd [#allocation12], %s84
      %s87 = sshll.u32 [#allocation11], 4
      %s88 = int_to_ptr.vmem [resolvable:$true] %s87
      %90 = dma.hbm_to_vmem [thread:$0]  %s8, 16, %s88, [#allocation12]
    $region37: #{tpu_custom_call.1} parent=1 // pred_fallthru
      _
    // Predicated region
    $region38: #{tpu_custom_call.1} parent=1 // pred_check
      _
    $region39: #{tpu_custom_call.1} parent=1 // pred_check_branch
      %92 = sbr.rel (0) target = $region41
    $region40: #{tpu_custom_call.1} parent=1 // pred_region
      %s94 = ssub.s32 16, 16
      %95 = vsyncadd [#allocation12], %s94
      %s97 = sshll.u32 [#allocation13], 4
      %s98 = int_to_ptr.vmem [resolvable:$true] %s97
      %100 = dma.hbm_to_vmem [thread:$0]  %s9, 16, %s98, [#allocation12]
    $region41: #{tpu_custom_call.1} parent=1 // pred_fallthru
      _
    // Predicated region
    $region42: #{tpu_custom_call.1} parent=1 // pred_check
      _
    $region43: #{tpu_custom_call.1} parent=1 // pred_check_branch
      %102 = sbr.rel (0) target = $region45
    $region44: #{tpu_custom_call.1} parent=1 // pred_region
      _
    $region45: #{tpu_custom_call.1} parent=1 // pred_fallthru
      _
    // Predicated region
    $region46: #{tpu_custom_call.1} parent=1 // pred_check
      _
    $region47: #{tpu_custom_call.1} parent=1 // pred_check_branch
      %104 = sbr.rel (0) target = $region49
    $region48: #{tpu_custom_call.1} parent=1 // pred_region
      _
    $region49: #{tpu_custom_call.1} parent=1 // pred_fallthru
      _
    // Predicated region
    $region50: #{tpu_custom_call.1} parent=1 // pred_check
      _
    $region51: #{tpu_custom_call.1} parent=1 // pred_check_branch
      %106 = sbr.rel (0) target = $region53
    $region52: #{tpu_custom_call.1} parent=1 // pred_region
      _
    $region53: #{tpu_custom_call.1} parent=1 // pred_fallthru
      _
    // Predicated region
    $region54: #{tpu_custom_call.1} parent=1 // pred_check
      _
    $region55: #{tpu_custom_call.1} parent=1 // pred_check_branch
      %108 = sbr.rel (0) target = $region57
    $region56: #{tpu_custom_call.1} parent=1 // pred_region
      %109 = dma.done [#allocation3], 128
    $region57: #{tpu_custom_call.1} parent=1 // pred_fallthru
      _
    // Predicated region
    $region58: #{tpu_custom_call.1} parent=1 // pred_check
      _
    $region59: #{tpu_custom_call.1} parent=1 // pred_check_branch
      %111 = sbr.rel (0) target = $region61
    $region60: #{tpu_custom_call.1} parent=1 // pred_region
      %112 = dma.done [#allocation6], 128
    $region61: #{tpu_custom_call.1} parent=1 // pred_fallthru
      _
    // Predicated region
    $region62: #{tpu_custom_call.1} parent=1 // pred_check
      _
    $region63: #{tpu_custom_call.1} parent=1 // pred_check_branch
      %114 = sbr.rel (0) target = $region65
    $region64: #{tpu_custom_call.1} parent=1 // pred_region
      %115 = dma.done [#allocation6], 16
    $region65: #{tpu_custom_call.1} parent=1 // pred_fallthru
      _
    // Predicated region
    $region66: #{tpu_custom_call.1} parent=1 // pred_check
      _
    $region67: #{tpu_custom_call.1} parent=1 // pred_check_branch
      %117 = sbr.rel (0) target = $region69
    $region68: #{tpu_custom_call.1} parent=1 // pred_region
      %118 = dma.done [#allocation9], 16
    $region69: #{tpu_custom_call.1} parent=1 // pred_fallthru
      _
    // Predicated region
    $region70: #{tpu_custom_call.1} parent=1 // pred_check
      _
    $region71: #{tpu_custom_call.1} parent=1 // pred_check_branch
      %120 = sbr.rel (0) target = $region73
    $region72: #{tpu_custom_call.1} parent=1 // pred_region
      %121 = dma.done [#allocation9], 16
    $region73: #{tpu_custom_call.1} parent=1 // pred_fallthru
      _
    // Predicated region
    $region74: #{tpu_custom_call.1} parent=1 // pred_check
      _
    $region75: #{tpu_custom_call.1} parent=1 // pred_check_branch
      %123 = sbr.rel (0) target = $region77
    $region76: #{tpu_custom_call.1} parent=1 // pred_region
      %124 = dma.done [#allocation12], 16
    $region77: #{tpu_custom_call.1} parent=1 // pred_fallthru
      _
    // Predicated region
    $region78: #{tpu_custom_call.1} parent=1 // pred_check
      _
    $region79: #{tpu_custom_call.1} parent=1 // pred_check_branch
      %126 = sbr.rel (0) target = $region81
    $region80: #{tpu_custom_call.1} parent=1 // pred_region
      %127 = dma.done [#allocation12], 16
    $region81: #{tpu_custom_call.1} parent=1 // pred_fallthru
      _
    %v129 = vld [vmem:[#allocation2] sm:$0xff]
    %v130 = vld [vmem:[%s1] sm:$0x1]
    %v131 = vld [vmem:[%s2] sm:$0x1]
    %vm132 = vcmask 130048
    %v133 = vsel %vm132, %v129, 0.0
    %v134 = vrot.slane %v133, 4
    %v135 = vadd.f32 %v133, %v134
    %v136 = vrot.slane %v135, 2
    %v137 = vadd.f32 %v135, %v136
    %v138 = vrot.slane %v137, 1
    %v139 = vadd.f32 %v137, %v138
    %v140 = vmul.f32 %v129, %v129
    %v141 = vsel %vm132, %v140, 0.0
    %v142 = vrot.slane %v141, 4
    %v143 = vadd.f32 %v141, %v142
    %v144 = vrot.slane %v143, 2
    %v145 = vadd.f32 %v143, %v144
    %v146 = vrot.slane %v145, 1
    %v147 = vadd.f32 %v145, %v146
    %v148 = vmul.f32 %v139, 0.125
    %v149 = vmul.f32 %v147, 0.125
    %v150 = vmul.f32 %v148, %v148
    %v151 = vsub.f32 %v149, %v150
    %v152 = vmax.f32 %v151, 0.0
    %v153 = vadd.f32 %v152, 1e-05
    %v154 = vrsqrt.pop %v153
    %v155 = vmul.f32 %v130, %v154
    %v156 = vmul.f32 %v148, %v155
    %v157 = vsub.f32 %v131, %v156
    %v158 = vld [vmem:[#allocation5] sm:$0xf]
    %v159 = vld [vmem:[#allocation5 + $0x4] sm:$0xf]
    %v160 = vld [vmem:[#allocation7] sm:$0x1]
    %v161 = vpack.c.bf16 %v157, %v157
    %v164 = vunpack.c.l.b16 %v158
    %v165 = vunpack.c.l.b16 %v159
    %v166 = vpack.c.b16 %v165, %v164
    %v169 = vsel %vm132, %v161, 0
    %171 = vmatprep.subr.bf16.mxu0 0
    %172 = vmatpush1.bf16.msra.mxu0 %v166
    %173 = vmatprep.subr.bf16.mxu0 0
    %174 = vmatpush1.bf16.msra.mxu0 0
    %175 = vmatprep.subr.bf16.mxu0 0
    %176 = vmatpush1.bf16.msra.mxu0 0
    %177 = vmatprep.subr.bf16.mxu0 0
    %178 = vmatpush1.bf16.msra.mxu0 0
    %179 = vmatprep.subr.bf16.mxu0 0
    %180 = vmatpush1.bf16.msra.mxu0 0
    %181 = vmatprep.subr.bf16.mxu0 0
    %182 = vmatpush1.bf16.msra.mxu0 0
    %183 = vmatprep.subr.bf16.mxu0 0
    %184 = vmatpush1.bf16.msra.mxu0 0
    %185 = vmatprep.subr.bf16.mxu0 0
    %186 = vmatpush1.bf16.msra.mxu0 0
    %187 = vmatprep.subr.bf16.mxu0 0
    %188 = vmatpush1.bf16.msra.mxu0 0
    %189 = vmatprep.subr.bf16.mxu0 0
    %190 = vmatpush1.bf16.msra.mxu0 0
    %191 = vmatprep.subr.bf16.mxu0 0
    %192 = vmatpush1.bf16.msra.mxu0 0
    %193 = vmatprep.subr.bf16.mxu0 0
    %194 = vmatpush1.bf16.msra.mxu0 0
    %195 = vmatprep.subr.bf16.mxu0 0
    %196 = vmatpush1.bf16.msra.mxu0 0
    %197 = vmatprep.subr.bf16.mxu0 0
    %198 = vmatpush1.bf16.msra.mxu0 0
    %199 = vmatprep.subr.bf16.mxu0 0
    %200 = vmatpush1.bf16.msra.mxu0 0
    %201 = vmatprep.subr.bf16.mxu0 0
    %202 = vmatpush1.bf16.msra.mxu0 0
    %203 = vmatprep.mubr.bf16.mxu0 0
    %204 = vmatmul.mubr.bf16.gmra.mrb[0].mxu0 %v169
    %v205 = vpop.f32.mrb[0].mxu0
    %v206 = vadd.f32 0.0, %v205
    %v207 = vpop.f32.mrb[0].mxu0
    %v208 = vpop.f32.mrb[0].mxu0
    %v209 = vpop.f32.mrb[0].mxu0
    %210 = vdwg.mxu0
    %v211 = vadd.f32 %v160, %v206
    %v213 = vlaneseq
    %v214 = vshrl.u32 %v213, 7
    %v215 = vsub.s32 0, %v214
    %v216 = vrot.slane %v155, %v215
    %v218 = vmul.f32 %v129, %v216
    %v219 = vpack.c.bf16 %v218, %v218
    %v221 = vlaneseq
    %v222 = vshrl.u32 %v221, 7
    %v223 = vsub.s32 0, %v222
    %v224 = vrot.slane %v211, %v223
    %v227 = vsel %vm132, %v219, 0
    %229 = vmatprep.subr.bf16.mxu0 0
    %230 = vmatpush1.bf16.msra.mxu0 %v166
    %231 = vmatprep.subr.bf16.mxu0 0
    %232 = vmatpush1.bf16.msra.mxu0 0
    %233 = vmatprep.subr.bf16.mxu0 0
    %234 = vmatpush1.bf16.msra.mxu0 0
    %235 = vmatprep.subr.bf16.mxu0 0
    %236 = vmatpush1.bf16.msra.mxu0 0
    %237 = vmatprep.subr.bf16.mxu0 0
    %238 = vmatpush1.bf16.msra.mxu0 0
    %239 = vmatprep.subr.bf16.mxu0 0
    %240 = vmatpush1.bf16.msra.mxu0 0
    %241 = vmatprep.subr.bf16.mxu0 0
    %242 = vmatpush1.bf16.msra.mxu0 0
    %243 = vmatprep.subr.bf16.mxu0 0
    %244 = vmatpush1.bf16.msra.mxu0 0
    %245 = vmatprep.subr.bf16.mxu0 0
    %246 = vmatpush1.bf16.msra.mxu0 0
    %247 = vmatprep.subr.bf16.mxu0 0
    %248 = vmatpush1.bf16.msra.mxu0 0
    %249 = vmatprep.subr.bf16.mxu0 0
    %250 = vmatpush1.bf16.msra.mxu0 0
    %251 = vmatprep.subr.bf16.mxu0 0
    %252 = vmatpush1.bf16.msra.mxu0 0
    %253 = vmatprep.subr.bf16.mxu0 0
    %254 = vmatpush1.bf16.msra.mxu0 0
    %255 = vmatprep.subr.bf16.mxu0 0
    %256 = vmatpush1.bf16.msra.mxu0 0
    %257 = vmatprep.subr.bf16.mxu0 0
    %258 = vmatpush1.bf16.msra.mxu0 0
    %259 = vmatprep.subr.bf16.mxu0 0
    %260 = vmatpush1.bf16.msra.mxu0 0
    %261 = vmatprep.mubr.bf16.mxu0 0
    %262 = vmatmul.mubr.bf16.gmra.mrb[0].mxu0 %v227
    %v263 = vpop.f32.mrb[0].mxu0
    %v264 = vadd.f32 %v224, %v263
    %v265 = vpop.f32.mrb[0].mxu0
    %v266 = vpop.f32.mrb[0].mxu0
    %v267 = vpop.f32.mrb[0].mxu0
    %268 = vdwg.mxu0
    %v269 = vmax.f32 %v264, 0.0
    %v270 = vld [vmem:[#allocation8] sm:$0x1]
    %v271 = vld [vmem:[#allocation10] sm:$0x1]
    %vm272 = vcmask 261120
    %v273 = vsel %vm272, %v269, 0.0
    %v274 = vrot.slane %v273, 4
    %v275 = vadd.f32 %v273, %v274
    %v276 = vrot.slane %v275, 2
    %v277 = vadd.f32 %v275, %v276
    %v278 = vrot.slane %v277, 1
    %v279 = vadd.f32 %v277, %v278
    %v280 = vmul.f32 %v269, %v269
    %v281 = vsel %vm272, %v280, 0.0
    %v282 = vrot.slane %v281, 4
    %v283 = vadd.f32 %v281, %v282
    %v284 = vrot.slane %v283, 2
    %v285 = vadd.f32 %v283, %v284
    %v286 = vrot.slane %v285, 1
    %v287 = vadd.f32 %v285, %v286
    %v288 = vmul.f32 %v279, 0.125
    %v289 = vmul.f32 %v287, 0.125
    %v290 = vmul.f32 %v288, %v288
    %v291 = vsub.f32 %v289, %v290
    %v292 = vmax.f32 %v291, 0.0
    %v293 = vadd.f32 %v292, 1e-05
    %v294 = vrsqrt.pop %v293
    %v295 = vmul.f32 %v270, %v294
    %v296 = vmul.f32 %v288, %v295
    %v297 = vsub.f32 %v271, %v296
    %v298 = vld [vmem:[%s7] sm:$0xf]
    %v299 = vld [vmem:[%s7 + $0x4] sm:$0xf]
    %v300 = vld [vmem:[%s7 + $0x8] sm:$0xf]
    %v301 = vld [vmem:[%s7 + $0xc] sm:$0xf]
    %v302 = vld [vmem:[#allocation11] sm:$0x1]
    %v303 = vpack.c.bf16 %v297, %v297
    %v308 = vunpack.c.l.b16 %v298
    %v309 = vunpack.c.l.b16 %v299
    %v310 = vunpack.c.l.b16 %v300
    %v311 = vunpack.c.l.b16 %v301
    %v312 = vpack.c.b16 %v309, %v308
    %v313 = vpack.c.b16 %v311, %v310
    %v317 = vsel %vm272, %v303, 0
    %319 = vmatprep.subr.bf16.mxu0 0
    %320 = vmatpush1.bf16.msra.mxu0 %v312
    %321 = vmatprep.subr.bf16.mxu0 0
    %322 = vmatpush1.bf16.msra.mxu0 %v313
    %323 = vmatprep.subr.bf16.mxu0 0
    %324 = vmatpush1.bf16.msra.mxu0 0
    %325 = vmatprep.subr.bf16.mxu0 0
    %326 = vmatpush1.bf16.msra.mxu0 0
    %327 = vmatprep.subr.bf16.mxu0 0
    %328 = vmatpush1.bf16.msra.mxu0 0
    %329 = vmatprep.subr.bf16.mxu0 0
    %330 = vmatpush1.bf16.msra.mxu0 0
    %331 = vmatprep.subr.bf16.mxu0 0
    %332 = vmatpush1.bf16.msra.mxu0 0
    %333 = vmatprep.subr.bf16.mxu0 0
    %334 = vmatpush1.bf16.msra.mxu0 0
    %335 = vmatprep.subr.bf16.mxu0 0
    %336 = vmatpush1.bf16.msra.mxu0 0
    %337 = vmatprep.subr.bf16.mxu0 0
    %338 = vmatpush1.bf16.msra.mxu0 0
    %339 = vmatprep.subr.bf16.mxu0 0
    %340 = vmatpush1.bf16.msra.mxu0 0
    %341 = vmatprep.subr.bf16.mxu0 0
    %342 = vmatpush1.bf16.msra.mxu0 0
    %343 = vmatprep.subr.bf16.mxu0 0
    %344 = vmatpush1.bf16.msra.mxu0 0
    %345 = vmatprep.subr.bf16.mxu0 0
    %346 = vmatpush1.bf16.msra.mxu0 0
    %347 = vmatprep.subr.bf16.mxu0 0
    %348 = vmatpush1.bf16.msra.mxu0 0
    %349 = vmatprep.subr.bf16.mxu0 0
    %350 = vmatpush1.bf16.msra.mxu0 0
    %351 = vmatprep.mubr.bf16.mxu0 0
    %352 = vmatmul.mubr.bf16.gmra.mrb[0].mxu0 %v317
    %v353 = vpop.f32.mrb[0].mxu0
    %v354 = vadd.f32 0.0, %v353
    %v355 = vpop.f32.mrb[0].mxu0
    %v356 = vpop.f32.mrb[0].mxu0
    %v357 = vpop.f32.mrb[0].mxu0
    %358 = vdwg.mxu0
    %v359 = vadd.f32 %v302, %v354
    %v361 = vlaneseq
    %v362 = vshrl.u32 %v361, 7
    %v363 = vsub.s32 0, %v362
    %v364 = vrot.slane %v295, %v363
    %v366 = vmul.f32 %v269, %v364
    %v367 = vpack.c.bf16 %v366, %v366
    %v369 = vlaneseq
    %v370 = vshrl.u32 %v369, 7
    %v371 = vsub.s32 0, %v370
    %v372 = vrot.slane %v359, %v371
    %v375 = vsel %vm272, %v367, 0
    %377 = vmatprep.subr.bf16.mxu0 0
    %378 = vmatpush1.bf16.msra.mxu0 %v312
    %379 = vmatprep.subr.bf16.mxu0 0
    %380 = vmatpush1.bf16.msra.mxu0 %v313
    %381 = vmatprep.subr.bf16.mxu0 0
    %382 = vmatpush1.bf16.msra.mxu0 0
    %383 = vmatprep.subr.bf16.mxu0 0
    %384 = vmatpush1.bf16.msra.mxu0 0
    %385 = vmatprep.subr.bf16.mxu0 0
    %386 = vmatpush1.bf16.msra.mxu0 0
    %387 = vmatprep.subr.bf16.mxu0 0
    %388 = vmatpush1.bf16.msra.mxu0 0
    %389 = vmatprep.subr.bf16.mxu0 0
    %390 = vmatpush1.bf16.msra.mxu0 0
    %391 = vmatprep.subr.bf16.mxu0 0
    %392 = vmatpush1.bf16.msra.mxu0 0
    %393 = vmatprep.subr.bf16.mxu0 0
    %394 = vmatpush1.bf16.msra.mxu0 0
    %395 = vmatprep.subr.bf16.mxu0 0
    %396 = vmatpush1.bf16.msra.mxu0 0
    %397 = vmatprep.subr.bf16.mxu0 0
    %398 = vmatpush1.bf16.msra.mxu0 0
    %399 = vmatprep.subr.bf16.mxu0 0
    %400 = vmatpush1.bf16.msra.mxu0 0
    %401 = vmatprep.subr.bf16.mxu0 0
    %402 = vmatpush1.bf16.msra.mxu0 0
    %403 = vmatprep.subr.bf16.mxu0 0
    %404 = vmatpush1.bf16.msra.mxu0 0
    %405 = vmatprep.subr.bf16.mxu0 0
    %406 = vmatpush1.bf16.msra.mxu0 0
    %407 = vmatprep.subr.bf16.mxu0 0
    %408 = vmatpush1.bf16.msra.mxu0 0
    %409 = vmatprep.mubr.bf16.mxu0 0
    %410 = vmatmul.mubr.bf16.gmra.mrb[0].mxu0 %v375
    %v411 = vpop.f32.mrb[0].mxu0
    %v412 = vadd.f32 %v372, %v411
    %v413 = vpop.f32.mrb[0].mxu0
    %v414 = vpop.f32.mrb[0].mxu0
    %v415 = vpop.f32.mrb[0].mxu0
    %416 = vdwg.mxu0
    %v417 = vmax.f32 %v412, 0.0
    %v418 = vld [vmem:[#allocation13] sm:$0x1]
    %v419 = vld [vmem:[%s10] sm:$0x1]
    %v420 = vsel %vm272, %v417, 0.0
    %v421 = vrot.slane %v420, 4
    %v422 = vadd.f32 %v420, %v421
    %v423 = vrot.slane %v422, 2
    %v424 = vadd.f32 %v422, %v423
    %v425 = vrot.slane %v424, 1
    %v426 = vadd.f32 %v424, %v425
    %v427 = vmul.f32 %v417, %v417
    %v428 = vsel %vm272, %v427, 0.0
    %v429 = vrot.slane %v428, 4
    %v430 = vadd.f32 %v428, %v429
    %v431 = vrot.slane %v430, 2
    %v432 = vadd.f32 %v430, %v431
    %v433 = vrot.slane %v432, 1
    %v434 = vadd.f32 %v432, %v433
    %v435 = vmul.f32 %v426, 0.125
    %v436 = vmul.f32 %v434, 0.125
    %v437 = vmul.f32 %v435, %v435
    %v438 = vsub.f32 %v436, %v437
    %v439 = vmax.f32 %v438, 0.0
    %v440 = vadd.f32 %v439, 1e-05
    %v441 = vrsqrt.pop %v440
    %v442 = vmul.f32 %v418, %v441
    %v443 = vmul.f32 %v435, %v442
    %v444 = vsub.f32 %v419, %v443
    %v445 = vld [vmem:[%s11] sm:$0xf]
    %v446 = vld [vmem:[%s11 + $0x4] sm:$0xf]
    %v447 = vld [vmem:[%s11 + $0x8] sm:$0xf]
    %v448 = vld [vmem:[%s11 + $0xc] sm:$0xf]
    %v449 = vld [vmem:[%s12] sm:$0x1]
    %v450 = vpack.c.bf16 %v444, %v444
    %v455 = vunpack.c.l.b16 %v445
    %v456 = vunpack.c.l.b16 %v446
    %v457 = vunpack.c.l.b16 %v447
    %v458 = vunpack.c.l.b16 %v448
    %v459 = vpack.c.b16 %v456, %v455
    %v460 = vpack.c.b16 %v458, %v457
    %v464 = vsel %vm272, %v450, 0
    %466 = vmatprep.subr.bf16.mxu0 0
    %467 = vmatpush1.bf16.msra.mxu0 %v459
    %468 = vmatprep.subr.bf16.mxu0 0
    %469 = vmatpush1.bf16.msra.mxu0 %v460
    %470 = vmatprep.subr.bf16.mxu0 0
    %471 = vmatpush1.bf16.msra.mxu0 0
    %472 = vmatprep.subr.bf16.mxu0 0
    %473 = vmatpush1.bf16.msra.mxu0 0
    %474 = vmatprep.subr.bf16.mxu0 0
    %475 = vmatpush1.bf16.msra.mxu0 0
    %476 = vmatprep.subr.bf16.mxu0 0
    %477 = vmatpush1.bf16.msra.mxu0 0
    %478 = vmatprep.subr.bf16.mxu0 0
    %479 = vmatpush1.bf16.msra.mxu0 0
    %480 = vmatprep.subr.bf16.mxu0 0
    %481 = vmatpush1.bf16.msra.mxu0 0
    %482 = vmatprep.subr.bf16.mxu0 0
    %483 = vmatpush1.bf16.msra.mxu0 0
    %484 = vmatprep.subr.bf16.mxu0 0
    %485 = vmatpush1.bf16.msra.mxu0 0
    %486 = vmatprep.subr.bf16.mxu0 0
    %487 = vmatpush1.bf16.msra.mxu0 0
    %488 = vmatprep.subr.bf16.mxu0 0
    %489 = vmatpush1.bf16.msra.mxu0 0
    %490 = vmatprep.subr.bf16.mxu0 0
    %491 = vmatpush1.bf16.msra.mxu0 0
    %492 = vmatprep.subr.bf16.mxu0 0
    %493 = vmatpush1.bf16.msra.mxu0 0
    %494 = vmatprep.subr.bf16.mxu0 0
    %495 = vmatpush1.bf16.msra.mxu0 0
    %496 = vmatprep.subr.bf16.mxu0 0
    %497 = vmatpush1.bf16.msra.mxu0 0
    %498 = vmatprep.mubr.bf16.mxu0 0
    %499 = vmatmul.mubr.bf16.gmra.mrb[0].mxu0 %v464
    %v500 = vpop.f32.mrb[0].mxu0
    %v501 = vadd.f32 0.0, %v500
    %v502 = vpop.f32.mrb[0].mxu0
    %v503 = vpop.f32.mrb[0].mxu0
    %v504 = vpop.f32.mrb[0].mxu0
    %505 = vdwg.mxu0
    %v506 = vadd.f32 %v449, %v501
    %v508 = vlaneseq
    %v509 = vshrl.u32 %v508, 7
    %v510 = vsub.s32 0, %v509
    %v511 = vrot.slane %v442, %v510
    %v513 = vmul.f32 %v417, %v511
    %v514 = vpack.c.bf16 %v513, %v513
    %v516 = vlaneseq
    %v517 = vshrl.u32 %v516, 7
    %v518 = vsub.s32 0, %v517
    %v519 = vrot.slane %v506, %v518
    %v522 = vsel %vm272, %v514, 0
    %524 = vmatprep.subr.bf16.mxu0 0
    %525 = vmatpush1.bf16.msra.mxu0 %v459
    %526 = vmatprep.subr.bf16.mxu0 0
    %527 = vmatpush1.bf16.msra.mxu0 %v460
    %528 = vmatprep.subr.bf16.mxu0 0
    %529 = vmatpush1.bf16.msra.mxu0 0
    %530 = vmatprep.subr.bf16.mxu0 0
    %531 = vmatpush1.bf16.msra.mxu0 0
    %532 = vmatprep.subr.bf16.mxu0 0
    %533 = vmatpush1.bf16.msra.mxu0 0
    %534 = vmatprep.subr.bf16.mxu0 0
    %535 = vmatpush1.bf16.msra.mxu0 0
    %536 = vmatprep.subr.bf16.mxu0 0
    %537 = vmatpush1.bf16.msra.mxu0 0
    %538 = vmatprep.subr.bf16.mxu0 0
    %539 = vmatpush1.bf16.msra.mxu0 0
    %540 = vmatprep.subr.bf16.mxu0 0
    %541 = vmatpush1.bf16.msra.mxu0 0
    %542 = vmatprep.subr.bf16.mxu0 0
    %543 = vmatpush1.bf16.msra.mxu0 0
    %544 = vmatprep.subr.bf16.mxu0 0
    %545 = vmatpush1.bf16.msra.mxu0 0
    %546 = vmatprep.subr.bf16.mxu0 0
    %547 = vmatpush1.bf16.msra.mxu0 0
    %548 = vmatprep.subr.bf16.mxu0 0
    %549 = vmatpush1.bf16.msra.mxu0 0
    %550 = vmatprep.subr.bf16.mxu0 0
    %551 = vmatpush1.bf16.msra.mxu0 0
    %552 = vmatprep.subr.bf16.mxu0 0
    %553 = vmatpush1.bf16.msra.mxu0 0
    %554 = vmatprep.subr.bf16.mxu0 0
    %555 = vmatpush1.bf16.msra.mxu0 0
    %556 = vmatprep.mubr.bf16.mxu0 0
    %557 = vmatmul.mubr.bf16.gmra.mrb[0].mxu0 %v522
    %v558 = vpop.f32.mrb[0].mxu0
    %v559 = vadd.f32 %v519, %v558
    %v560 = vpop.f32.mrb[0].mxu0
    %v561 = vpop.f32.mrb[0].mxu0
    %v562 = vpop.f32.mrb[0].mxu0
    %563 = vdwg.mxu0
    %v564 = vtanh.pop %v559
    %565 = vst [vmem:[#allocation14] sm:$0xff] %v564
    // Predicated region
    $region82: #{tpu_custom_call.1} parent=1 // pred_check
      _
    $region83: #{tpu_custom_call.1} parent=1 // pred_check_branch
      %567 = sbr.rel (0) target = $region85
    $region84: #{tpu_custom_call.1} parent=1 // pred_region
      %s569 = ssub.s32 128, 128
      %570 = vsyncadd [#allocation4], %s569
      %s572 = sshll.u32 [#allocation14], 4
      %s573 = int_to_ptr.vmem [resolvable:$true] %s572
      %575 = dma.vmem_to_hbm [thread:$0]  %s573, 128, %s13, [#allocation4]
    $region85: #{tpu_custom_call.1} parent=1 // pred_fallthru
      _
    // Predicated region
    $region86: #{tpu_custom_call.1} parent=1 // pred_check
      _
    $region87: #{tpu_custom_call.1} parent=1 // pred_check_branch
      %577 = sbr.rel (0) target = $region89
    $region88: #{tpu_custom_call.1} parent=1 // pred_region
      %578 = dma.done [#allocation4], 128
    $region89: #{tpu_custom_call.1} parent=1 // pred_fallthru
      _
    %579 = vsyncpa [#allocation3], 1
    %580 = vsyncpa [#allocation6], 1
    %581 = vsyncpa [#allocation9], 1
    %582 = vsyncpa [#allocation12], 1
    %583 = vsyncpa [#allocation4], 1

</llo_original>
